<compile_context>
chip_gen: v6e
topology: v6e:2x2x1
jax: 0.10.0
libtpu: 0.0.40
codegen_flags: <defaults>
</compile_context>

<pallas_src>
import jax
import jax.numpy as jnp
from jax.experimental import pallas as pl
from jax.experimental.pallas import tpu as pltpu


def rectified_tanh(x):
    # rectified_tanh(x) = max(tanh(x), 0)
    return jnp.maximum(jnp.tanh(x), 0.0)


def _round_up(x, m):
    return (x + m - 1) // m * m


def make_rnn_seq_kernel(tau_over_dt, unroll):
    inv_tau = 1.0 / float(tau_over_dt)

    def kernel(drive_ref, h0_ref, JT_ref, fr_ref, hfin_ref):
        # grid = (batch_blocks, T // unroll); axis 1 is the serial time axis.
        s = pl.program_id(1)

        # The hidden-state carry lives in the resident h_final output block
        # (constant index_map over the time axis).  Initialize it once per
        # batch block from the hidden-state input.
        @pl.when(s == 0)
        def _init():
            hfin_ref[...] = h0_ref[...]

        h = hfin_ref[...]                       # (Bb, Hp) f32 carry
        fr = rectified_tanh(h)                  # fr_before; one EUP pass / grid step

        # Statically unrolled inner time loop: only the recurrent matmul and
        # the pointwise state update sit on the sequential critical path.
        for u in range(unroll):
            rec = jnp.dot(fr.astype(JT_ref.dtype), JT_ref[...],
                          preferred_element_type=jnp.float32)
            h = h + inv_tau * (rec + drive_ref[u] - h)
            fr = rectified_tanh(h)
            fr_ref[u] = fr.astype(fr_ref.dtype)   # streamed out, lane-dense bf16

        hfin_ref[...] = h                       # one carry store per grid step

    return kernel


def regularized_rnn_forward_seq(x_seq, hidden, J, Bmat, bx, W_out, b_out,
                                tau_over_dt=5, batch_block=None, max_unroll=4,
                                recurrent_dtype=jnp.float32):
    """Run the RNN over a whole sequence x_seq: (T, B, I) in ONE pallas_call.

    Returns (out_seq (T, B, O), h_final (B, H), reg_seq (T,))."""
    f32 = jnp.float32
    T, B, I = x_seq.shape
    H = hidden.shape[1]
    O = W_out.shape[0]

    # ---- hardware-friendly padded shapes (lane = 128, sublane = 8) ---------
    Hp = _round_up(H, 128)
    Bp = _round_up(B, 8)
    if batch_block is None:
        # v7x has 2 TensorCores; give the "parallel" batch axis >= 2 blocks
        # whenever the padded batch allows, keeping blocks sublane-aligned.
        batch_block = Bp // 2 if (Bp >= 16 and Bp % 16 == 0) else Bp
    assert batch_block % 8 == 0 and Bp % batch_block == 0
    Bb = batch_block
    nb = Bp // Bb

    # Largest divisor of T that is <= max_unroll: timesteps per grid step.
    U = 1
    for cand in range(min(max_unroll, T), 0, -1):
        if T % cand == 0:
            U = cand
            break
    nt = T // U

    # ---- hoisted input projection (no time dependency) ---------------------
    # drive[t] = x[t] @ B^T + bx as one large, MXU-friendly matmul outside the
    # serial kernel (bf16 operands, f32 accumulation).
    drive = jnp.einsum("tbi,hi->tbh", x_seq.astype(jnp.bfloat16),
                       Bmat.astype(jnp.bfloat16),
                       preferred_element_type=f32) + bx.astype(f32)
    drive_p = jnp.zeros((T, Bp, Hp), f32).at[:, :B, :H].set(drive)

    # Padded initial hidden state / recurrent weight (pre-transposed once).
    h0_p = jnp.zeros((Bp, Hp), f32).at[:B, :H].set(hidden.astype(f32))
    JT_p = jnp.zeros((Hp, Hp), recurrent_dtype).at[:H, :H].set(
        J.T.astype(recurrent_dtype))

    kernel = make_rnn_seq_kernel(tau_over_dt, U)
    grid = (nb, nt)

    in_specs = [
        pl.BlockSpec((U, Bb, Hp), lambda bi, s: (s, bi, 0)),   # drive (streamed)
        pl.BlockSpec((Bb, Hp), lambda bi, s: (bi, 0)),         # hidden init
        pl.BlockSpec((Hp, Hp), lambda bi, s: (0, 0)),          # J^T (VMEM-resident)
    ]
    out_specs = (
        pl.BlockSpec((U, Bb, Hp), lambda bi, s: (s, bi, 0)),   # fr[t] (streamed)
        pl.BlockSpec((Bb, Hp), lambda bi, s: (bi, 0)),         # h carry / final
    )
    out_shape = (
        jax.ShapeDtypeStruct((T, Bp, Hp), jnp.bfloat16),
        jax.ShapeDtypeStruct((Bp, Hp), f32),
    )

    jt_bytes = Hp * Hp * jnp.dtype(recurrent_dtype).itemsize
    block_bytes = (2 * U * Bb * Hp * 4        # drive blocks (double-buffered)
                   + 2 * U * Bb * Hp * 2      # fr blocks (double-buffered)
                   + 2 * jt_bytes             # resident J^T
                   + 4 * Bb * Hp * 4)         # h0 + h_final blocks
    # v7x has 64 MiB of VMEM per TensorCore (v5e/v6e: 128 MiB) - stay under it.
    vmem_limit = int(min(max(2 * block_bytes, 16 * 1024 * 1024),
                         64 * 1024 * 1024))

    flops = 2 * T * Bp * Hp * Hp                    # only the recurrent matmul
    transcendentals = (T + nt) * Bp * Hp            # tanh (incl. per-block recompute)
    bytes_accessed = (drive_p.size * 4 + h0_p.size * 4 + jt_bytes
                      + T * Bp * Hp * 2 + Bp * Hp * 4)

    fr_seq, h_fin = pl.pallas_call(
        kernel,
        grid=grid,
        in_specs=in_specs,
        out_specs=out_specs,
        out_shape=out_shape,
        # Donate the (padded) hidden-state input buffer to the h_final output.
        input_output_aliases={1: 1},
        compiler_params=pltpu.CompilerParams(
            dimension_semantics=("parallel", "arbitrary"),
            vmem_limit_bytes=vmem_limit),
        cost_estimate=pl.CostEstimate(
            flops=int(flops), transcendentals=int(transcendentals),
            bytes_accessed=int(bytes_accessed)),
    )(drive_p, h0_p, JT_p)

    # ---- hoisted output projection + regularizer (fully parallel) ----------
    fr_bf = fr_seq[:, :B, :H]                                   # drop padding
    out_seq = jnp.einsum("tbh,oh->tbo", fr_bf, W_out.astype(jnp.bfloat16),
                         preferred_element_type=f32) + b_out.astype(f32)
    fr_f32 = fr_bf.astype(f32)
    reg_seq = jnp.sum(fr_f32 * fr_f32, axis=(1, 2))
    h_final = h_fin[:B, :H]
    return out_seq, h_final, reg_seq


def regularized_rnn_forward(x, hidden, J, Bmat, bx, W_out, b_out, tau_over_dt=5):
    """Exact module-forward semantics: one step (input, hidden) -> (out, hidden, reg)."""
    out_seq, h_final, reg_seq = regularized_rnn_forward_seq(
        x[None], hidden, J, Bmat, bx, W_out, b_out, tau_over_dt)
    return out_seq[0], h_final, reg_seq[0]


# ---------------- pure-JAX references (PyTorch semantics, f32) ----------------

def reference_step(x, hidden, J, Bmat, bx, W_out, b_out, tau_over_dt=5):
    fr_before = jnp.maximum(jnp.tanh(hidden), 0.0)
    total = (J @ fr_before.T + Bmat @ x.T + bx[:, None]).T
    h_new = hidden + (1.0 / tau_over_dt) * (-hidden + total)
    fr = jnp.maximum(jnp.tanh(h_new), 0.0)
    out = fr @ W_out.T + b_out
    reg = jnp.sum(fr ** 2)
    return out, h_new, reg


def reference_sequence(x_seq, hidden, J, Bmat, bx, W_out, b_out, tau_over_dt=5):
    outs, regs = [], []
    h = hidden
    for t in range(x_seq.shape[0]):
        o, h, r = reference_step(x_seq[t], h, J, Bmat, bx, W_out, b_out, tau_over_dt)
        outs.append(o)
        regs.append(r)
    return jnp.stack(outs), h, jnp.stack(regs)


if __name__ == "__main__":
    T, batch_size, input_size, hidden_size, output_size = 8, 4, 16, 32, 8
    g, h_scale, tau_over_dt = 1.5, 1.0, 5

    key = jax.random.PRNGKey(0)
    k_x, k_h, k_J, k_B, k_W, k_b = jax.random.split(key, 6)

    # Deterministic, __init__-style parameter initialization
    J = jax.random.normal(k_J, (hidden_size, hidden_size), jnp.float32) * (
        g / jnp.sqrt(jnp.float32(hidden_size)))
    Bmat = jax.random.normal(k_B, (hidden_size, input_size), jnp.float32) * (
        h_scale / jnp.sqrt(jnp.float32(input_size)))
    bx = jnp.zeros((hidden_size,), jnp.float32)
    W_out = jax.random.normal(k_W, (output_size, hidden_size), jnp.float32) * (
        1.0 / jnp.sqrt(jnp.float32(hidden_size)))
    b_out = jax.random.normal(k_b, (output_size,), jnp.float32) * 0.01

    x_seq = jax.random.normal(k_x, (T, batch_size, input_size), jnp.float32)
    hidden = jax.random.normal(k_h, (batch_size, hidden_size), jnp.float32)

    # --- single step (module forward semantics) ---
    out1, h1, reg1 = regularized_rnn_forward(
        x_seq[0], hidden, J, Bmat, bx, W_out, b_out, tau_over_dt)
    jax.block_until_ready((out1, h1, reg1))
    r_out1, r_h1, r_reg1 = reference_step(
        x_seq[0], hidden, J, Bmat, bx, W_out, b_out, tau_over_dt)
    # bf16 is only used for the one-shot hoisted projections / fr streaming;
    # the recurrence itself is f32, so tolerances hold with margin.
    assert jnp.allclose(out1, r_out1, atol=5e-2, rtol=5e-2), "step output mismatch"
    assert jnp.allclose(h1, r_h1, atol=5e-2, rtol=5e-2), "step hidden mismatch"
    assert jnp.allclose(reg1, r_reg1, atol=5e-2, rtol=5e-2), "step reg mismatch"

    # --- fused sequence (time loop inside one pipelined pallas_call) ---
    out_seq, h_fin, reg_seq = regularized_rnn_forward_seq(
        x_seq, hidden, J, Bmat, bx, W_out, b_out, tau_over_dt)
    jax.block_until_ready((out_seq, h_fin, reg_seq))
    r_out_seq, r_h_fin, r_reg_seq = reference_sequence(
        x_seq, hidden, J, Bmat, bx, W_out, b_out, tau_over_dt)
    assert jnp.allclose(out_seq, r_out_seq, atol=5e-2, rtol=5e-2), "seq output mismatch"
    assert jnp.allclose(h_fin, r_h_fin, atol=5e-2, rtol=5e-2), "seq hidden mismatch"
    assert jnp.allclose(reg_seq, r_reg_seq, atol=5e-2, rtol=5e-2), "seq reg mismatch"

    print("KERNEL_OK")
</pallas_src>

<mosaic_0001>
module attributes {stable_mosaic.version = 11 : i64} {
  func.func @kernel(%arg0: i32, %arg1: i32, %arg2: memref<1x8x128xf32, #tpu.memory_space<vmem>>, %arg3: memref<8x128xf32, #tpu.memory_space<vmem>>, %arg4: memref<128x128xf32, #tpu.memory_space<vmem>>, %arg5: memref<1x8x128xbf16, #tpu.memory_space<vmem>>, %arg6: memref<8x128xf32, #tpu.memory_space<vmem>>) attributes {dimension_semantics = [#tpu.dimension_semantics<parallel>, #tpu.dimension_semantics<arbitrary>], iteration_bounds = array<i64: 1, 1>, scalar_prefetch = 0 : i64, scratch_operands = 0 : i64, tpu.core_type = #tpu.core_type<tc>, window_params = [{transform_indices = @transform_0, window_bounds = array<i64: 1, 8, 128>}, {transform_indices = @transform_1, window_bounds = array<i64: 8, 128>}, {pipeline_mode = #tpu.pipeline_mode<synchronous>, transform_indices = @transform_2, window_bounds = array<i64: 128, 128>}, {transform_indices = @transform_3, window_bounds = array<i64: 1, 8, 128>}, {transform_indices = @transform_4, window_bounds = array<i64: 8, 128>}]} {
    %c0_i32 = arith.constant 0 : i32
    %0 = arith.cmpi eq, %arg1, %c0_i32 : i32
    %1 = arith.extui %0 : i1 to i32
    %c0_i32_0 = arith.constant 0 : i32
    %2 = arith.cmpi ne, %1, %c0_i32_0 : i32
    scf.if %2 {
      %c0_15 = arith.constant 0 : index
      %c0_16 = arith.constant 0 : index
      %24 = vector.load %arg3[%c0_15, %c0_16] : memref<8x128xf32, #tpu.memory_space<vmem>>, vector<8x128xf32>
      %c0_17 = arith.constant 0 : index
      %c0_18 = arith.constant 0 : index
      %25 = vector.load %arg6[%c0_17, %c0_18] : memref<8x128xf32, #tpu.memory_space<vmem>>, vector<8x128xf32>
      tpu.vector_store %arg6[%c0_17, %c0_18], %24 {strides = array<i32>} : memref<8x128xf32, #tpu.memory_space<vmem>>, vector<8x128xf32>,
    } else {
    }
    %c0 = arith.constant 0 : index
    %c0_1 = arith.constant 0 : index
    %3 = vector.load %arg6[%c0, %c0_1] : memref<8x128xf32, #tpu.memory_space<vmem>>, vector<8x128xf32>
    %4 = math.tanh %3 : vector<8x128xf32>
    %cst = arith.constant 0.000000e+00 : f32
    %5 = vector.broadcast %cst : f32 to vector<8x128xf32>
    %6 = arith.maximumf %4, %5 : vector<8x128xf32>
    %c0_2 = arith.constant 0 : index
    %c0_3 = arith.constant 0 : index
    %7 = vector.load %arg4[%c0_2, %c0_3] : memref<128x128xf32, #tpu.memory_space<vmem>>, vector<128x128xf32>
    %cst_4 = arith.constant dense<0.000000e+00> : vector<8x128xf32>
    %8 = tpu.matmul %6, %7, %cst_4 {dimension_numbers = #tpu.dot_dimension_numbers<[1], [0], [0], [1], [0, 0, 1, 1], [], []>} : vector<8x128xf32>, vector<128x128xf32>, vector<8x128xf32> -> vector<8x128xf32>
    %c0_5 = arith.constant 0 : index
    %c0_6 = arith.constant 0 : index
    %c0_7 = arith.constant 0 : index
    %9 = vector.load %arg2[%c0_5, %c0_6, %c0_7] : memref<1x8x128xf32, #tpu.memory_space<vmem>>, vector<1x8x128xf32>
    %10 = vector.shape_cast %9 : vector<1x8x128xf32> to vector<8x128xf32>
    %11 = arith.addf %8, %10 : vector<8x128xf32>
    %12 = arith.subf %11, %3 : vector<8x128xf32>
    %cst_8 = arith.constant 2.000000e-01 : f32
    %13 = vector.broadcast %cst_8 : f32 to vector<8x128xf32>
    %14 = arith.mulf %13, %12 : vector<8x128xf32>
    %15 = arith.addf %3, %14 : vector<8x128xf32>
    %16 = math.tanh %15 : vector<8x128xf32>
    %cst_9 = arith.constant 0.000000e+00 : f32
    %17 = vector.broadcast %cst_9 : f32 to vector<8x128xf32>
    %18 = arith.maximumf %16, %17 : vector<8x128xf32>
    %19 = arith.truncf %18 : vector<8x128xf32> to vector<8x128xbf16>
    %c0_10 = arith.constant 0 : index
    %c0_11 = arith.constant 0 : index
    %c0_12 = arith.constant 0 : index
    %20 = vector.load %arg5[%c0_10, %c0_11, %c0_12] : memref<1x8x128xbf16, #tpu.memory_space<vmem>>, vector<1x8x128xbf16>
    %21 = vector.shape_cast %20 : vector<1x8x128xbf16> to vector<8x128xbf16>
    %22 = vector.shape_cast %19 : vector<8x128xbf16> to vector<1x8x128xbf16>
    tpu.vector_store %arg5[%c0_10, %c0_11, %c0_12], %22 {strides = array<i32>} : memref<1x8x128xbf16, #tpu.memory_space<vmem>>, vector<1x8x128xbf16>,
    %c0_13 = arith.constant 0 : index
    %c0_14 = arith.constant 0 : index
    %23 = vector.load %arg6[%c0_13, %c0_14] : memref<8x128xf32, #tpu.memory_space<vmem>>, vector<8x128xf32>
    tpu.vector_store %arg6[%c0_13, %c0_14], %15 {strides = array<i32>} : memref<8x128xf32, #tpu.memory_space<vmem>>, vector<8x128xf32>,
    return
  }
  func.func @transform_0(%arg0: i32, %arg1: i32) -> (i32, i32, i32) {
    %c0_i32 = arith.constant 0 : i32
    %c0_i32_0 = arith.constant 0 : i32
    return %arg1, %arg0, %c0_i32 : i32, i32, i32
  }
  func.func @transform_1(%arg0: i32, %arg1: i32) -> (i32, i32) {
    %c0_i32 = arith.constant 0 : i32
    %c0_i32_0 = arith.constant 0 : i32
    return %arg0, %c0_i32 : i32, i32
  }
  func.func @transform_2(%arg0: i32, %arg1: i32) -> (i32, i32) {
    %c0_i32 = arith.constant 0 : i32
    %c0_i32_0 = arith.constant 0 : i32
    %c0_i32_1 = arith.constant 0 : i32
    return %c0_i32, %c0_i32_0 : i32, i32
  }
  func.func @transform_3(%arg0: i32, %arg1: i32) -> (i32, i32, i32) {
    %c0_i32 = arith.constant 0 : i32
    %c0_i32_0 = arith.constant 0 : i32
    return %arg1, %arg0, %c0_i32 : i32, i32, i32
  }
  func.func @transform_4(%arg0: i32, %arg1: i32) -> (i32, i32) {
    %c0_i32 = arith.constant 0 : i32
    %c0_i32_0 = arith.constant 0 : i32
    return %arg0, %c0_i32 : i32, i32
  }
}

</mosaic_0001>

<llo_original>
// kernel: tpu_custom_call.1
$region0: #{tpu_custom_call.1}
  #allocation0 [shape = 'u32[]', space=smem, size = 0x4, offset = 0x4, fixed_abs, tag = 'smem constant byte address 0x4 - core index']
  #allocation1 [shape = 'u32[144,128]{1,0:T(1,128)}', space=vmem, size = 0x12000, scoped, tag = 'internal scratch']
  %s0 = inlined_call_operand.vmem [shape: f32[1,8,128], index: 0, kind: input, shape index: {}]
  %s1 = inlined_call_operand.hbm [shape: f32[8,128], index: 1, kind: input, shape index: {}, may-alias: {1,4}]
  %s2 = inlined_call_operand.hbm [shape: f32[128,128], index: 2, kind: input, shape index: {}]
  %s3 = inlined_call_operand.hbm [shape: bf16[1,8,128], index: 3, kind: output, shape index: {0}]
  %s4 = inlined_call_operand.hbm [shape: f32[8,128], index: 4, kind: output, shape index: {1}, may-alias: {1,4}]
  %5 = xla_tuple %s3, %s4
  %s6 = sld [smem:[#allocation0]]
  $region42: #{tpu_custom_call.1} parent=0
    _
  %s8 = ssub.s32 1, %s6
  %s9 = scalar_select 0, %s8, %s6
  $region1: #{tpu_custom_call.1} parent=0
    #allocation2 [shape = 'u8[4096]{0}', space=vmem, size = 0x1000, scoped, tag = 'input window, operand 1, single buffered']
    #allocation3 [shape = 's32[1]{0}', space=sflag, size = 0x4, scoped, tag = 'scoped memory for tpu_custom_call.1']
    #allocation4 [shape = 's32[1]{0}', space=sflag, size = 0x4, scoped, tag = 'scoped memory for tpu_custom_call.1']
    #allocation5 [shape = 'u8[65536]{0}', space=vmem, size = 0x10000, scoped, tag = 'input window, operand 2, single buffered']
    #allocation6 [shape = 's32[1]{0}', space=sflag, size = 0x4, scoped, tag = 'scoped memory for tpu_custom_call.1']
    #allocation7 [shape = 'u8[2048]{0}', space=vmem, size = 0x800, scoped, tag = 'output window, operand 0, single buffered']
    #allocation8 [shape = 'u8[4096]{0}', space=vmem, size = 0x1000, scoped, tag = 'output window, operand 1, single buffered']
    #allocation9 [shape = 's32[1]{0}', space=sflag, size = 0x4, scoped, tag = 'scoped memory for tpu_custom_call.1']
    %10 = vsyncpa [#allocation3], 0
    %11 = vsyncpa [#allocation6], 0
    %12 = vsyncpa [#allocation4], 0
    %13 = vsyncpa [#allocation9], 0
    // Predicated region
    $region2: #{tpu_custom_call.1} parent=1 // pred_check
      _
    $region3: #{tpu_custom_call.1} parent=1 // pred_check_branch
      %15 = sbr.rel (0) target = $region5
    $region4: #{tpu_custom_call.1} parent=1 // pred_region
      _
    $region5: #{tpu_custom_call.1} parent=1 // pred_fallthru
      _
    // Predicated region
    $region6: #{tpu_custom_call.1} parent=1 // pred_check
      _
    $region7: #{tpu_custom_call.1} parent=1 // pred_check_branch
      %17 = sbr.rel (0) target = $region9
    $region8: #{tpu_custom_call.1} parent=1 // pred_region
      %s19 = ssub.s32 128, 128
      %20 = vsyncadd [#allocation3], %s19
      %s22 = sshll.u32 [#allocation2], 4
      %s23 = int_to_ptr.vmem [resolvable:$true] %s22
      %25 = dma.hbm_to_vmem [thread:$0]  %s1, 128, %s23, [#allocation3]
    $region9: #{tpu_custom_call.1} parent=1 // pred_fallthru
      _
    // Predicated region
    $region10: #{tpu_custom_call.1} parent=1 // pred_check
      _
    $region11: #{tpu_custom_call.1} parent=1 // pred_check_branch
      %27 = sbr.rel (0) target = $region13
    $region12: #{tpu_custom_call.1} parent=1 // pred_region
      %s29 = ssub.s32 2048, 2048
      %30 = vsyncadd [#allocation6], %s29
      %s31 = sshll.u32 [#allocation5], 4
      %s32 = int_to_ptr.vmem [resolvable:$true] %s31
      %37 = dma.hbm_to_vmem [thread:$0]  %s2, 2048, %s32, [#allocation6], 128, 128, 8
    $region13: #{tpu_custom_call.1} parent=1 // pred_fallthru
      _
    // Predicated region
    $region14: #{tpu_custom_call.1} parent=1 // pred_check
      _
    $region15: #{tpu_custom_call.1} parent=1 // pred_check_branch
      %39 = sbr.rel (0) target = $region17
    $region16: #{tpu_custom_call.1} parent=1 // pred_region
      %40 = dma.done [#allocation3], 128
    $region17: #{tpu_custom_call.1} parent=1 // pred_fallthru
      _
    // Predicated region
    $region18: #{tpu_custom_call.1} parent=1 // pred_check
      _
    $region19: #{tpu_custom_call.1} parent=1 // pred_check_branch
      %42 = sbr.rel (0) target = $region21
    $region20: #{tpu_custom_call.1} parent=1 // pred_region
      %43 = dma.done [#allocation6], 2048
    $region21: #{tpu_custom_call.1} parent=1 // pred_fallthru
      _
    %p44 = scmp.eq.s32.totalorder 0, 0
    // Predicated region
    $region22: #{tpu_custom_call.1} parent=1 // pred_check
      %p45 = pneg %p44
    $region23: #{tpu_custom_call.1} parent=1 // pred_check_branch
      %47 = sbr.rel (%p45) target = $region25
    $region24: #{tpu_custom_call.1} parent=1 // pred_region
      %v48 = vld [vmem:[#allocation2] sm:$0xff]
      %49 = vst [vmem:[#allocation8] sm:$0xff] %v48
    $region25: #{tpu_custom_call.1} parent=1 // pred_fallthru
      _
    %v50 = vld [vmem:[#allocation8] sm:$0xff]
    %v51 = vtanh.pop %v50
    %v52 = vmax.f32 %v51, 0.0
    %v53 = vld [vmem:[#allocation5] sm:$0xff]
    %v54 = vld [vmem:[#allocation5 + $0x8] sm:$0xff]
    %v55 = vld [vmem:[#allocation5 + $0x10] sm:$0xff]
    %v56 = vld [vmem:[#allocation5 + $0x18] sm:$0xff]
    %v57 = vld [vmem:[#allocation5 + $0x20] sm:$0xff]
    %v58 = vld [vmem:[#allocation5 + $0x28] sm:$0xff]
    %v59 = vld [vmem:[#allocation5 + $0x30] sm:$0xff]
    %v60 = vld [vmem:[#allocation5 + $0x38] sm:$0xff]
    %v61 = vld [vmem:[#allocation5 + $0x40] sm:$0xff]
    %v62 = vld [vmem:[#allocation5 + $0x48] sm:$0xff]
    %v63 = vld [vmem:[#allocation5 + $0x50] sm:$0xff]
    %v64 = vld [vmem:[#allocation5 + $0x58] sm:$0xff]
    %v65 = vld [vmem:[#allocation5 + $0x60] sm:$0xff]
    %v66 = vld [vmem:[#allocation5 + $0x68] sm:$0xff]
    %v67 = vld [vmem:[#allocation5 + $0x70] sm:$0xff]
    %v68 = vld [vmem:[#allocation5 + $0x78] sm:$0xff]
    %v69 = vld [vmem:[%s0] sm:$0xff]
    %70 = vmatprep.subr.mxu0 0.0
    %71 = vmatpush1.msra.mxu0 %v68
    %72 = vmatprep.subr.mxu0 0.0
    %73 = vmatpush1.msra.mxu0 %v67
    %74 = vmatprep.subr.mxu0 0.0
    %75 = vmatpush1.msra.mxu0 %v66
    %76 = vmatprep.subr.mxu0 0.0
    %77 = vmatpush1.msra.mxu0 %v65
    %78 = vmatprep.subr.mxu0 0.0
    %79 = vmatpush1.msra.mxu0 %v64
    %80 = vmatprep.subr.mxu0 0.0
    %81 = vmatpush1.msra.mxu0 %v63
    %82 = vmatprep.subr.mxu0 0.0
    %83 = vmatpush1.msra.mxu0 %v62
    %84 = vmatprep.subr.mxu0 0.0
    %85 = vmatpush1.msra.mxu0 %v61
    %86 = vmatprep.subr.mxu0 0.0
    %87 = vmatpush1.msra.mxu0 %v60
    %88 = vmatprep.subr.mxu0 0.0
    %89 = vmatpush1.msra.mxu0 %v59
    %90 = vmatprep.subr.mxu0 0.0
    %91 = vmatpush1.msra.mxu0 %v58
    %92 = vmatprep.subr.mxu0 0.0
    %93 = vmatpush1.msra.mxu0 %v57
    %94 = vmatprep.subr.mxu0 0.0
    %95 = vmatpush1.msra.mxu0 %v56
    %96 = vmatprep.subr.mxu0 0.0
    %97 = vmatpush1.msra.mxu0 %v55
    %98 = vmatprep.subr.mxu0 0.0
    %99 = vmatpush1.msra.mxu0 %v54
    %100 = vmatprep.subr.mxu0 0.0
    %101 = vmatpush1.msra.mxu0 %v53
    %102 = vmatprep.subr.mxu0 0.0
    %103 = vmatpush2.msra.mxu0 0.0
    %104 = vmatprep.subr.mxu0 0.0
    %105 = vmatpush2.msra.mxu0 0.0
    %106 = vmatprep.subr.mxu0 0.0
    %107 = vmatpush2.msra.mxu0 0.0
    %108 = vmatprep.subr.mxu0 0.0
    %109 = vmatpush2.msra.mxu0 0.0
    %110 = vmatprep.subr.mxu0 0.0
    %111 = vmatpush2.msra.mxu0 0.0
    %112 = vmatprep.subr.mxu0 0.0
    %113 = vmatpush2.msra.mxu0 0.0
    %114 = vmatprep.subr.mxu0 0.0
    %115 = vmatpush2.msra.mxu0 0.0
    %116 = vmatprep.subr.mxu0 0.0
    %117 = vmatpush2.msra.mxu0 0.0
    %118 = vmatprep.subr.mxu0 0.0
    %119 = vmatpush2.msra.mxu0 0.0
    %120 = vmatprep.subr.mxu0 0.0
    %121 = vmatpush2.msra.mxu0 0.0
    %122 = vmatprep.subr.mxu0 0.0
    %123 = vmatpush2.msra.mxu0 0.0
    %124 = vmatprep.subr.mxu0 0.0
    %125 = vmatpush2.msra.mxu0 0.0
    %126 = vmatprep.subr.mxu0 0.0
    %127 = vmatpush2.msra.mxu0 0.0
    %128 = vmatprep.subr.mxu0 0.0
    %129 = vmatpush2.msra.mxu0 0.0
    %130 = vmatprep.subr.mxu0 0.0
    %131 = vmatpush2.msra.mxu0 0.0
    %132 = vmatprep.subr.mxu0 0.0
    %133 = vmatpush2.msra.mxu0 0.0
    %134 = vmatprep.mubr.f32.mxu0 0.0
    %135 = vmatmul.mubr.f32.gmra.mxu0 %v52
    %v136 = vpop.f32.mrf.mxu0
    %v137 = vadd.f32 %v69, %v136
    %v138 = vpop.f32.mrf.mxu0
    %139 = vdwg.mxu0
    %v140 = vsub.f32 %v137, %v50
    %v141 = vmul.f32 %v140, 0.2
    %v142 = vadd.f32 %v50, %v141
    %v143 = vtanh.pop %v142
    %v144 = vmax.f32 %v143, 0.0
    %v145 = vpack.c.bf16 %v144, %v144
    %146 = vst [vmem:[#allocation7] sm:$0xf] %v145
    %147 = vst [vmem:[#allocation8] sm:$0xff] %v142
    // Predicated region
    $region26: #{tpu_custom_call.1} parent=1 // pred_check
      _
    $region27: #{tpu_custom_call.1} parent=1 // pred_check_branch
      %149 = sbr.rel (0) target = $region29
    $region28: #{tpu_custom_call.1} parent=1 // pred_region
      %s151 = ssub.s32 64, 64
      %152 = vsyncadd [#allocation4], %s151
      %s154 = sshll.u32 [#allocation7], 4
      %s155 = int_to_ptr.vmem [resolvable:$true] %s154
      %157 = dma.vmem_to_hbm [thread:$0]  %s155, 64, %s3, [#allocation4]
    $region29: #{tpu_custom_call.1} parent=1 // pred_fallthru
      _
    // Predicated region
    $region30: #{tpu_custom_call.1} parent=1 // pred_check
      _
    $region31: #{tpu_custom_call.1} parent=1 // pred_check_branch
      %159 = sbr.rel (0) target = $region33
    $region32: #{tpu_custom_call.1} parent=1 // pred_region
      %s161 = ssub.s32 128, 128
      %162 = vsyncadd [#allocation9], %s161
      %s164 = sshll.u32 [#allocation8], 4
      %s165 = int_to_ptr.vmem [resolvable:$true] %s164
      %167 = dma.vmem_to_hbm [thread:$0]  %s165, 128, %s4, [#allocation9]
    $region33: #{tpu_custom_call.1} parent=1 // pred_fallthru
      _
    // Predicated region
    $region34: #{tpu_custom_call.1} parent=1 // pred_check
      _
    $region35: #{tpu_custom_call.1} parent=1 // pred_check_branch
      %169 = sbr.rel (0) target = $region37
    $region36: #{tpu_custom_call.1} parent=1 // pred_region
      %170 = dma.done [#allocation4], 64
    $region37: #{tpu_custom_call.1} parent=1 // pred_fallthru
      _
    // Predicated region
    $region38: #{tpu_custom_call.1} parent=1 // pred_check
      _
    $region39: #{tpu_custom_call.1} parent=1 // pred_check_branch
      %172 = sbr.rel (0) target = $region41
    $region40: #{tpu_custom_call.1} parent=1 // pred_region
      %173 = dma.done [#allocation9], 128
    $region41: #{tpu_custom_call.1} parent=1 // pred_fallthru
      _
    %174 = vsyncpa [#allocation3], 1
    %175 = vsyncpa [#allocation6], 1
    %176 = vsyncpa [#allocation4], 1
    %177 = vsyncpa [#allocation9], 1

</llo_original>
